<compile_context>
chip_gen: v7x
topology: tpu7x:2x2x1
jax: 0.10.0
libtpu: 0.0.40
codegen_flags: <defaults>
</compile_context>

<pallas_src>
import functools
import math

import jax
import jax.numpy as jnp
from jax.experimental import pallas as pl
from jax.experimental.pallas import tpu as pltpu


def _round_up(x, m):
    return ((x + m - 1) // m) * m


def _policy_kernel(has_state, H, *refs):
    """Single fused forward step.

    Gate layout per cell (contiguous, H lanes each, tail-padded to G4p):
        f | i | o | g        (r gate folded out: cue=None => r*m_t == 0)
    """
    if has_state:
        (feat_ref, h_a_ref, c_a_ref, h_c_ref, c_c_ref,
         wih_ref, whh_a_ref, whh_c_ref, b_a_ref, b_c_ref,
         wp_ref, bp_ref, wv_ref, bv_ref, mask_ref, gum_ref,
         policy_ref, misc_ref,
         h_a_out_ref, c_a_out_ref, h_c_out_ref, c_c_out_ref) = refs
    else:
        (feat_ref,
         wih_ref, b_a_ref, b_c_ref,
         wp_ref, bp_ref, wv_ref, bv_ref, mask_ref, gum_ref,
         policy_ref, misc_ref,
         h_a_out_ref, c_a_out_ref, h_c_out_ref, c_c_out_ref) = refs

    G4p = b_a_ref.shape[-1]
    TB = feat_ref.shape[0]
    Ap = mask_ref.shape[-1]

    # ---- fused input-hidden matmul (x shared by both cells): [TB,F]@[F,2*G4p]
    xg = jnp.dot(feat_ref[...], wih_ref[...],
                 preferred_element_type=jnp.float32)
    pre_a = xg[:, :G4p] + b_a_ref[...]
    pre_c = xg[:, G4p:] + b_c_ref[...]

    if has_state:
        pre_a = pre_a + jnp.dot(h_a_ref[...], whh_a_ref[...],
                                preferred_element_type=jnp.float32)
        pre_c = pre_c + jnp.dot(h_c_ref[...], whh_c_ref[...],
                                preferred_element_type=jnp.float32)
        c_a0 = c_a_ref[...]
        c_c0 = c_c_ref[...]
    else:
        # reset step: h == c == 0, hidden matmuls and state DMAs skipped
        c_a0 = jnp.zeros((TB, H), jnp.float32)
        c_c0 = jnp.zeros((TB, H), jnp.float32)

    def cell(pre, c):
        f = jax.nn.sigmoid(pre[:, 0 * H:1 * H])
        i = jax.nn.sigmoid(pre[:, 1 * H:2 * H])
        o = jax.nn.sigmoid(pre[:, 2 * H:3 * H])
        g = jnp.tanh(pre[:, 3 * H:4 * H])
        c_new = f * c + i * g
        h_new = o * jnp.tanh(c_new)
        return h_new, c_new

    h_a_new, c_a_new = cell(pre_a, c_a0)
    h_c_new, c_c_new = cell(pre_c, c_c0)

    h_a_bf = h_a_new.astype(jnp.bfloat16)
    h_c_bf = h_c_new.astype(jnp.bfloat16)
    h_a_out_ref[...] = h_a_bf
    c_a_out_ref[...] = c_a_new
    h_c_out_ref[...] = h_c_bf
    c_c_out_ref[...] = c_c_new

    # ---- policy head (ActionNet + CategoricalMasked) ----
    logits = jnp.dot(h_a_bf, wp_ref[...],
                     preferred_element_type=jnp.float32) + bp_ref[...]
    mask = mask_ref[...] != 0
    fmin = jnp.finfo(jnp.float32).min
    masked_logits = jnp.where(mask, logits, fmin)

    zmax = jnp.max(masked_logits, axis=-1, keepdims=True)
    z = masked_logits - zmax
    ez = jnp.exp(z)
    sez = jnp.sum(ez, axis=-1, keepdims=True)
    inv_sez = 1.0 / sez                      # narrow [TB,1] reciprocal
    probs = ez * inv_sez                     # VPU multiply, no wide divide
    norm_logits = z - jnp.log(sez)           # log-softmax (Categorical.logits)
    policy_ref[...] = probs

    # ---- Gumbel-max sampling (noise streamed in from the wrapper) ----
    perturbed = masked_logits + gum_ref[...]
    pmax = jnp.max(perturbed, axis=-1, keepdims=True)
    ids = jax.lax.broadcasted_iota(jnp.int32, (TB, Ap), 1)
    action = jnp.min(jnp.where(perturbed == pmax, ids, Ap),
                     axis=-1, keepdims=True)                 # [TB,1] int32

    logp = jnp.sum(jnp.where(ids == action, norm_logits, 0.0),
                   axis=-1, keepdims=True)

    # mask norm_logits BEFORE the multiply so no -inf * 0 is ever formed
    ent = -jnp.sum(jnp.where(mask, norm_logits, 0.0) * probs,
                   axis=-1, keepdims=True)

    # ---- value head: lane reduce instead of an N=1 MXU matmul ----
    value = (jnp.sum(h_c_new * wv_ref[...], axis=-1, keepdims=True)
             + bv_ref[...])

    # ---- pack per-row scalars into a lane-dense [TB,128] slab ----
    lane = jax.lax.broadcasted_iota(jnp.int32, (TB, 128), 1)
    misc = jnp.where(lane == 0, action.astype(jnp.float32), 0.0)
    misc = jnp.where(lane == 1, logp, misc)
    misc = jnp.where(lane == 2, ent, misc)
    misc = jnp.where(lane == 3, value, misc)
    misc_ref[...] = misc


def init_params(key, feature_dim, action_dim, lstm_hidden_dim):
    """Deterministic init, uniform(-1/sqrt(fan_in), 1/sqrt(fan_in)); 5 gates."""
    H, F, A = lstm_hidden_dim, feature_dim, action_dim
    ks = jax.random.split(key, 10)

    def u(k, shape, fan_in):
        b = 1.0 / math.sqrt(fan_in)
        return jax.random.uniform(k, shape, jnp.float32, -b, b)

    return dict(
        wih_a=u(ks[0], (F, 5 * H), F),
        whh_a=u(ks[1], (H, 5 * H), H),
        b_a=u(ks[2], (1, 5 * H), H),
        wih_c=u(ks[3], (F, 5 * H), F),
        whh_c=u(ks[4], (H, 5 * H), H),
        b_c=u(ks[5], (1, 5 * H), H),
        wp=u(ks[6], (H, A), H),
        bp=u(ks[7], (1, A), H),
        wv=u(ks[8], (H, 1), H),
        bv=u(ks[9], (1, 1), H),
    )


def pack_params(params):
    """Drop the dead r-gate, pack gates contiguously, pad totals, cast bf16."""
    F, five_h = params["wih_a"].shape
    H = five_h // 5
    A = params["wp"].shape[1]
    G4 = 4 * H
    G4p = _round_up(G4, 128)
    Ap = _round_up(A, 128)

    def strip_r_and_pad(w):
        # [..., 5H] with gate order (f,i,o,r,g) -> [..., G4p] = (f|i|o|g) + pad
        f, i, o, r, g = jnp.split(w, 5, axis=-1)
        del r   # cue=None => r * m_t == 0 exactly; columns are dead weight
        cat = jnp.concatenate([f, i, o, g], axis=-1)
        pad = [(0, 0)] * (w.ndim - 1) + [(0, G4p - G4)]
        return jnp.pad(cat, pad)

    wih = jnp.concatenate([strip_r_and_pad(params["wih_a"]),
                           strip_r_and_pad(params["wih_c"])], axis=-1)
    return dict(
        H=H, A=A, F=F, G4p=G4p, Ap=Ap,
        wih=wih.astype(jnp.bfloat16),                                # [F,2*G4p]
        whh_a=strip_r_and_pad(params["whh_a"]).astype(jnp.bfloat16),  # [H,G4p]
        whh_c=strip_r_and_pad(params["whh_c"]).astype(jnp.bfloat16),
        b_a=strip_r_and_pad(params["b_a"]).astype(jnp.float32),       # [1,G4p]
        b_c=strip_r_and_pad(params["b_c"]).astype(jnp.float32),
        wp=jnp.pad(params["wp"], ((0, 0), (0, Ap - A))).astype(jnp.bfloat16),
        bp=jnp.pad(params["bp"], ((0, 0), (0, Ap - A))).astype(jnp.float32),
        wv=params["wv"][:, 0][None, :].astype(jnp.float32),           # [1,H]
        bv=params["bv"].astype(jnp.float32),                          # [1,1]
    )


def _nbytes(shape, dtype):
    n = 1
    for s in shape:
        n *= int(s)
    return n * jnp.dtype(dtype).itemsize


def eplstm_policy_forward(obs, packed, states_lstm=None, mask=None,
                          rng_key=None):
    """Mirrors EpLSTMRecurrentActorCriticPolicy.forward (cue=None path)."""
    B = obs.shape[0]
    feat = obs.reshape(B, -1)                     # FlattenExtractor
    F = feat.shape[1]
    H, A, G4p, Ap = packed["H"], packed["A"], packed["G4p"], packed["Ap"]
    assert F == packed["F"]

    # Batch tiling: >= 2 grid steps once the padded batch hits 16 rows (keeps
    # both v7x TensorCores busy); TB grows to 256 for large batches.
    Bp8 = _round_up(max(B, 1), 8)
    if Bp8 >= 16:
        TB = min(256, _round_up(max(Bp8 // 2, 8), 8))
    else:
        TB = Bp8
    Bp = _round_up(B, TB)
    grid = (Bp // TB,)

    def pad_b(x, cols, dtype):
        out = jnp.zeros((Bp, cols), dtype)
        return out.at[:B, :x.shape[1]].set(x.astype(dtype))

    feat_p = pad_b(feat, F, jnp.bfloat16)

    has_state = states_lstm is not None
    if has_state:
        (h_a0, c_a0), (h_c0, c_c0) = states_lstm
        h_a = pad_b(h_a0, H, jnp.bfloat16)
        c_a = pad_b(c_a0, H, jnp.float32)
        h_c = pad_b(h_c0, H, jnp.bfloat16)
        c_c = pad_b(c_c0, H, jnp.float32)

    # TODO(synk): DND.get_memory / save_memory (cue != None) not implemented;
    # cue=None => m_t == 0, folded out of the kernel.

    mask_full = (jnp.ones((B, A), jnp.int8) if mask is None
                 else mask.astype(jnp.int8))
    mask_p = pad_b(mask_full, Ap, jnp.int8)       # padded actions are masked

    # Gumbel(0,1) noise for Gumbel-max categorical sampling.  Generated in the
    # wrapper (pltpu.prng_* has no CPU/interpret lowering) — tiny f32 stream.
    gum = jax.random.gumbel(rng_key, (Bp, Ap), jnp.float32)

    batch_map = lambda i: (i, 0)        # batch-tiled operands
    resident_map = lambda i: (0, 0)     # weights stay VMEM-resident

    in_specs = [pl.BlockSpec((TB, F), batch_map)]
    args = [feat_p]
    if has_state:
        in_specs += [pl.BlockSpec((TB, H), batch_map)] * 4
        args += [h_a, c_a, h_c, c_c]
    in_specs += [pl.BlockSpec((F, 2 * G4p), resident_map)]
    args += [packed["wih"]]
    if has_state:
        in_specs += [pl.BlockSpec((H, G4p), resident_map)] * 2
        args += [packed["whh_a"], packed["whh_c"]]
    in_specs += [
        pl.BlockSpec((1, G4p), resident_map),     # b_actor
        pl.BlockSpec((1, G4p), resident_map),     # b_critic
        pl.BlockSpec((H, Ap), resident_map),      # wp
        pl.BlockSpec((1, Ap), resident_map),      # bp
        pl.BlockSpec((1, H), resident_map),       # wv row
        pl.BlockSpec((1, 1), resident_map),       # bv
        pl.BlockSpec((TB, Ap), batch_map),        # mask (int8)
        pl.BlockSpec((TB, Ap), batch_map),        # gumbel noise
    ]
    args += [packed["b_a"], packed["b_c"], packed["wp"], packed["bp"],
             packed["wv"], packed["bv"], mask_p, gum]

    out_specs = (
        pl.BlockSpec((TB, Ap), batch_map),        # policy
        pl.BlockSpec((TB, 128), batch_map),       # misc slab
        pl.BlockSpec((TB, H), batch_map),         # h_actor_new (bf16)
        pl.BlockSpec((TB, H), batch_map),         # c_actor_new
        pl.BlockSpec((TB, H), batch_map),         # h_critic_new (bf16)
        pl.BlockSpec((TB, H), batch_map),         # c_critic_new
    )
    out_shapes = (
        jax.ShapeDtypeStruct((Bp, Ap), jnp.float32),
        jax.ShapeDtypeStruct((Bp, 128), jnp.float32),
        jax.ShapeDtypeStruct((Bp, H), jnp.bfloat16),
        jax.ShapeDtypeStruct((Bp, H), jnp.float32),
        jax.ShapeDtypeStruct((Bp, H), jnp.bfloat16),
        jax.ShapeDtypeStruct((Bp, H), jnp.float32),
    )

    # Size the VMEM budget from the actual plan (everything double-buffered by
    # default) with generous margin; cap below v7x's 64 MiB physical VMEM.
    resident_bytes = sum(_nbytes(a.shape, a.dtype) for a in
                         ([packed["wih"], packed["b_a"], packed["b_c"],
                           packed["wp"], packed["bp"], packed["wv"],
                           packed["bv"]]
                          + ([packed["whh_a"], packed["whh_c"]]
                             if has_state else [])))
    tile_in = (_nbytes((TB, F), jnp.bfloat16)
               + _nbytes((TB, Ap), jnp.int8) + _nbytes((TB, Ap), jnp.float32)
               + (2 * _nbytes((TB, H), jnp.bfloat16)
                  + 2 * _nbytes((TB, H), jnp.float32) if has_state else 0))
    tile_out = (_nbytes((TB, Ap), jnp.float32) + _nbytes((TB, 128), jnp.float32)
                + 2 * _nbytes((TB, H), jnp.bfloat16)
                + 2 * _nbytes((TB, H), jnp.float32))
    plan_bytes = 2 * (resident_bytes + tile_in + tile_out)
    vmem_limit = int(min(max(2 * plan_bytes, 32 << 20), 56 << 20))

    kernel = functools.partial(_policy_kernel, has_state, H)
    outs = pl.pallas_call(
        kernel,
        out_shape=out_shapes,
        grid=grid,
        in_specs=in_specs,
        out_specs=out_specs,
        compiler_params=pltpu.CompilerParams(
            dimension_semantics=("parallel",),
            vmem_limit_bytes=vmem_limit,
        ),
    )(*args)

    policy_p, misc, h_a2, c_a2, h_c2, c_c2 = outs
    policy = policy_p[:B, :A]
    action = misc[:B, 0].astype(jnp.int32)
    log_prob = misc[:B, 1]
    entropy = misc[:B, 2]
    value = misc[:B, 3:4]
    # h states are carried in bf16 (matmul operand dtype); c states in f32.
    new_states = [(h_a2[:B], c_a2[:B]), (h_c2[:B], c_c2[:B])]
    return (action, policy, log_prob, entropy, value, new_states)


if __name__ == "__main__":
    # Small shapes: obs [B=2, C=4, H=4, W=4] -> feature_dim=64, hidden=32, A=6
    B, C, Hs, Ws = 2, 4, 4, 4
    feature_dim = C * Hs * Ws
    action_dim = 6
    lstm_hidden_dim = 32

    root = jax.random.PRNGKey(0)
    k_param, k_obs, k_s1, k_s2 = jax.random.split(root, 4)

    params = init_params(k_param, feature_dim, action_dim, lstm_hidden_dim)
    packed = pack_params(params)
    obs = jax.random.normal(k_obs, (B, C, Hs, Ws), jnp.float32)

    # mask: disable the last action for every batch element
    mask = jnp.ones((B, action_dim), jnp.int32).at[:, -1].set(0)

    # step 1: reset (states_lstm=None) -> zero-state kernel variant
    action, policy, log_prob, entropy, value, states = eplstm_policy_forward(
        obs, packed, states_lstm=None, mask=mask, rng_key=k_s1)
    # step 2: recurrent step with the carried states -> full kernel variant
    action2, policy2, log_prob2, entropy2, value2, states2 = \
        eplstm_policy_forward(obs, packed, states_lstm=states, mask=mask,
                              rng_key=k_s2)

    jax.block_until_ready((action, policy, log_prob, entropy, value, states,
                           action2, policy2, value2, states2))

    # light sanity checks
    for act, pol, val, st in ((action, policy, value, states),
                              (action2, policy2, value2, states2)):
        assert act.shape == (B,)
        assert pol.shape == (B, action_dim)
        assert val.shape == (B, 1)
        assert st[0][0].shape == (B, lstm_hidden_dim)
        assert st[1][1].shape == (B, lstm_hidden_dim)
        assert bool(jnp.all(jnp.isfinite(pol)))
        assert bool(jnp.all(pol[:, -1] < 1e-6))          # masked action ~0 prob
        assert bool(jnp.all(jnp.abs(pol.sum(-1) - 1.0) < 1e-4))
        assert bool(jnp.all((act >= 0) & (act < action_dim - 1)))
    assert bool(jnp.all(jnp.isfinite(log_prob))) and bool(
        jnp.all(jnp.isfinite(entropy)))
    print("KERNEL_OK")
</pallas_src>

<mosaic_0001>
module attributes {stable_mosaic.version = 11 : i64} {
  func.func @_policy_kernel(%arg0: i32, %arg1: memref<8x64xbf16, #tpu.memory_space<vmem>>, %arg2: memref<64x256xbf16, #tpu.memory_space<vmem>>, %arg3: memref<1x128xf32, #tpu.memory_space<vmem>>, %arg4: memref<1x128xf32, #tpu.memory_space<vmem>>, %arg5: memref<32x128xbf16, #tpu.memory_space<vmem>>, %arg6: memref<1x128xf32, #tpu.memory_space<vmem>>, %arg7: memref<1x32xf32, #tpu.memory_space<vmem>>, %arg8: memref<1x1xf32, #tpu.memory_space<vmem>>, %arg9: memref<8x128xi8, #tpu.memory_space<vmem>>, %arg10: memref<8x128xf32, #tpu.memory_space<vmem>>, %arg11: memref<8x128xf32, #tpu.memory_space<vmem>>, %arg12: memref<8x128xf32, #tpu.memory_space<vmem>>, %arg13: memref<8x32xbf16, #tpu.memory_space<vmem>>, %arg14: memref<8x32xf32, #tpu.memory_space<vmem>>, %arg15: memref<8x32xbf16, #tpu.memory_space<vmem>>, %arg16: memref<8x32xf32, #tpu.memory_space<vmem>>) attributes {dimension_semantics = [#tpu.dimension_semantics<parallel>], iteration_bounds = array<i64: 1>, scalar_prefetch = 0 : i64, scratch_operands = 0 : i64, tpu.core_type = #tpu.core_type<tc>, window_params = [{transform_indices = @transform_0, window_bounds = array<i64: 8, 64>}, {pipeline_mode = #tpu.pipeline_mode<synchronous>, transform_indices = @transform_1, window_bounds = array<i64: 64, 256>}, {pipeline_mode = #tpu.pipeline_mode<synchronous>, transform_indices = @transform_2, window_bounds = array<i64: 1, 128>}, {pipeline_mode = #tpu.pipeline_mode<synchronous>, transform_indices = @transform_3, window_bounds = array<i64: 1, 128>}, {pipeline_mode = #tpu.pipeline_mode<synchronous>, transform_indices = @transform_4, window_bounds = array<i64: 32, 128>}, {pipeline_mode = #tpu.pipeline_mode<synchronous>, transform_indices = @transform_5, window_bounds = array<i64: 1, 128>}, {pipeline_mode = #tpu.pipeline_mode<synchronous>, transform_indices = @transform_6, window_bounds = array<i64: 1, 32>}, {pipeline_mode = #tpu.pipeline_mode<synchronous>, transform_indices = @transform_7, window_bounds = array<i64: 1, 1>}, {transform_indices = @transform_8, window_bounds = array<i64: 8, 128>}, {transform_indices = @transform_9, window_bounds = array<i64: 8, 128>}, {transform_indices = @transform_10, window_bounds = array<i64: 8, 128>}, {transform_indices = @transform_11, window_bounds = array<i64: 8, 128>}, {transform_indices = @transform_12, window_bounds = array<i64: 8, 32>}, {transform_indices = @transform_13, window_bounds = array<i64: 8, 32>}, {transform_indices = @transform_14, window_bounds = array<i64: 8, 32>}, {transform_indices = @transform_15, window_bounds = array<i64: 8, 32>}]} {
    %c0 = arith.constant 0 : index
    %c0_0 = arith.constant 0 : index
    %0 = vector.load %arg1[%c0, %c0_0] : memref<8x64xbf16, #tpu.memory_space<vmem>>, vector<8x64xbf16>
    %c0_1 = arith.constant 0 : index
    %c0_2 = arith.constant 0 : index
    %1 = vector.load %arg2[%c0_1, %c0_2] : memref<64x256xbf16, #tpu.memory_space<vmem>>, vector<64x256xbf16>
    %cst = arith.constant dense<0.000000e+00> : vector<8x256xf32>
    %2 = tpu.matmul %0, %1, %cst {dimension_numbers = #tpu.dot_dimension_numbers<[1], [0], [0], [1], [0, 0, 1, 1], [], []>} : vector<8x64xbf16>, vector<64x256xbf16>, vector<8x256xf32> -> vector<8x256xf32>
    %3 = vector.extract_strided_slice %2 {offsets = [0, 0], sizes = [8, 128], strides = [1, 1]} : vector<8x256xf32> to vector<8x128xf32>
    %c0_3 = arith.constant 0 : index
    %c0_4 = arith.constant 0 : index
    %4 = vector.load %arg3[%c0_3, %c0_4] : memref<1x128xf32, #tpu.memory_space<vmem>>, vector<1x128xf32>
    %5 = vector.broadcast %4 : vector<1x128xf32> to vector<8x128xf32>
    %6 = arith.addf %3, %5 : vector<8x128xf32>
    %7 = vector.extract_strided_slice %2 {offsets = [0, 128], sizes = [8, 128], strides = [1, 1]} : vector<8x256xf32> to vector<8x128xf32>
    %c0_5 = arith.constant 0 : index
    %c0_6 = arith.constant 0 : index
    %8 = vector.load %arg4[%c0_5, %c0_6] : memref<1x128xf32, #tpu.memory_space<vmem>>, vector<1x128xf32>
    %9 = vector.broadcast %8 : vector<1x128xf32> to vector<8x128xf32>
    %10 = arith.addf %7, %9 : vector<8x128xf32>
    %cst_7 = arith.constant 0.000000e+00 : f32
    %11 = vector.broadcast %cst_7 : f32 to vector<8x32xf32>
    %cst_8 = arith.constant 0.000000e+00 : f32
    %12 = vector.broadcast %cst_8 : f32 to vector<8x32xf32>
    %13 = vector.extract_strided_slice %6 {offsets = [0, 0], sizes = [8, 32], strides = [1, 1]} : vector<8x128xf32> to vector<8x32xf32>
    %14 = arith.negf %13 : vector<8x32xf32>
    %15 = math.exp %14 : vector<8x32xf32>
    %cst_9 = arith.constant 1.000000e+00 : f32
    %16 = vector.broadcast %cst_9 : f32 to vector<8x32xf32>
    %17 = arith.addf %16, %15 : vector<8x32xf32>
    %18 = arith.divf %16, %17 : vector<8x32xf32>
    %19 = vector.extract_strided_slice %6 {offsets = [0, 32], sizes = [8, 32], strides = [1, 1]} : vector<8x128xf32> to vector<8x32xf32>
    %20 = arith.negf %19 : vector<8x32xf32>
    %21 = math.exp %20 : vector<8x32xf32>
    %cst_10 = arith.constant 1.000000e+00 : f32
    %22 = vector.broadcast %cst_10 : f32 to vector<8x32xf32>
    %23 = arith.addf %22, %21 : vector<8x32xf32>
    %24 = arith.divf %22, %23 : vector<8x32xf32>
    %25 = vector.extract_strided_slice %6 {offsets = [0, 64], sizes = [8, 32], strides = [1, 1]} : vector<8x128xf32> to vector<8x32xf32>
    %26 = arith.negf %25 : vector<8x32xf32>
    %27 = math.exp %26 : vector<8x32xf32>
    %cst_11 = arith.constant 1.000000e+00 : f32
    %28 = vector.broadcast %cst_11 : f32 to vector<8x32xf32>
    %29 = arith.addf %28, %27 : vector<8x32xf32>
    %30 = arith.divf %28, %29 : vector<8x32xf32>
    %31 = vector.extract_strided_slice %6 {offsets = [0, 96], sizes = [8, 32], strides = [1, 1]} : vector<8x128xf32> to vector<8x32xf32>
    %32 = math.tanh %31 : vector<8x32xf32>
    %33 = arith.mulf %18, %11 : vector<8x32xf32>
    %34 = arith.mulf %24, %32 : vector<8x32xf32>
    %35 = arith.addf %33, %34 : vector<8x32xf32>
    %36 = math.tanh %35 : vector<8x32xf32>
    %37 = arith.mulf %30, %36 : vector<8x32xf32>
    %38 = vector.extract_strided_slice %10 {offsets = [0, 0], sizes = [8, 32], strides = [1, 1]} : vector<8x128xf32> to vector<8x32xf32>
    %39 = arith.negf %38 : vector<8x32xf32>
    %40 = math.exp %39 : vector<8x32xf32>
    %cst_12 = arith.constant 1.000000e+00 : f32
    %41 = vector.broadcast %cst_12 : f32 to vector<8x32xf32>
    %42 = arith.addf %41, %40 : vector<8x32xf32>
    %43 = arith.divf %41, %42 : vector<8x32xf32>
    %44 = vector.extract_strided_slice %10 {offsets = [0, 32], sizes = [8, 32], strides = [1, 1]} : vector<8x128xf32> to vector<8x32xf32>
    %45 = arith.negf %44 : vector<8x32xf32>
    %46 = math.exp %45 : vector<8x32xf32>
    %cst_13 = arith.constant 1.000000e+00 : f32
    %47 = vector.broadcast %cst_13 : f32 to vector<8x32xf32>
    %48 = arith.addf %47, %46 : vector<8x32xf32>
    %49 = arith.divf %47, %48 : vector<8x32xf32>
    %50 = vector.extract_strided_slice %10 {offsets = [0, 64], sizes = [8, 32], strides = [1, 1]} : vector<8x128xf32> to vector<8x32xf32>
    %51 = arith.negf %50 : vector<8x32xf32>
    %52 = math.exp %51 : vector<8x32xf32>
    %cst_14 = arith.constant 1.000000e+00 : f32
    %53 = vector.broadcast %cst_14 : f32 to vector<8x32xf32>
    %54 = arith.addf %53, %52 : vector<8x32xf32>
    %55 = arith.divf %53, %54 : vector<8x32xf32>
    %56 = vector.extract_strided_slice %10 {offsets = [0, 96], sizes = [8, 32], strides = [1, 1]} : vector<8x128xf32> to vector<8x32xf32>
    %57 = math.tanh %56 : vector<8x32xf32>
    %58 = arith.mulf %43, %12 : vector<8x32xf32>
    %59 = arith.mulf %49, %57 : vector<8x32xf32>
    %60 = arith.addf %58, %59 : vector<8x32xf32>
    %61 = math.tanh %60 : vector<8x32xf32>
    %62 = arith.mulf %55, %61 : vector<8x32xf32>
    %63 = arith.truncf %37 : vector<8x32xf32> to vector<8x32xbf16>
    %64 = arith.truncf %62 : vector<8x32xf32> to vector<8x32xbf16>
    %c0_15 = arith.constant 0 : index
    %c0_16 = arith.constant 0 : index
    %65 = vector.load %arg13[%c0_15, %c0_16] : memref<8x32xbf16, #tpu.memory_space<vmem>>, vector<8x32xbf16>
    tpu.vector_store %arg13[%c0_15, %c0_16], %63 {strides = array<i32>} : memref<8x32xbf16, #tpu.memory_space<vmem>>, vector<8x32xbf16>,
    %c0_17 = arith.constant 0 : index
    %c0_18 = arith.constant 0 : index
    %66 = vector.load %arg14[%c0_17, %c0_18] : memref<8x32xf32, #tpu.memory_space<vmem>>, vector<8x32xf32>
    tpu.vector_store %arg14[%c0_17, %c0_18], %35 {strides = array<i32>} : memref<8x32xf32, #tpu.memory_space<vmem>>, vector<8x32xf32>,
    %c0_19 = arith.constant 0 : index
    %c0_20 = arith.constant 0 : index
    %67 = vector.load %arg15[%c0_19, %c0_20] : memref<8x32xbf16, #tpu.memory_space<vmem>>, vector<8x32xbf16>
    tpu.vector_store %arg15[%c0_19, %c0_20], %64 {strides = array<i32>} : memref<8x32xbf16, #tpu.memory_space<vmem>>, vector<8x32xbf16>,
    %c0_21 = arith.constant 0 : index
    %c0_22 = arith.constant 0 : index
    %68 = vector.load %arg16[%c0_21, %c0_22] : memref<8x32xf32, #tpu.memory_space<vmem>>, vector<8x32xf32>
    tpu.vector_store %arg16[%c0_21, %c0_22], %60 {strides = array<i32>} : memref<8x32xf32, #tpu.memory_space<vmem>>, vector<8x32xf32>,
    %c0_23 = arith.constant 0 : index
    %c0_24 = arith.constant 0 : index
    %69 = vector.load %arg5[%c0_23, %c0_24] : memref<32x128xbf16, #tpu.memory_space<vmem>>, vector<32x128xbf16>
    %cst_25 = arith.constant dense<0.000000e+00> : vector<8x128xf32>
    %70 = tpu.matmul %63, %69, %cst_25 {dimension_numbers = #tpu.dot_dimension_numbers<[1], [0], [0], [1], [0, 0, 1, 1], [], []>} : vector<8x32xbf16>, vector<32x128xbf16>, vector<8x128xf32> -> vector<8x128xf32>
    %c0_26 = arith.constant 0 : index
    %c0_27 = arith.constant 0 : index
    %71 = vector.load %arg6[%c0_26, %c0_27] : memref<1x128xf32, #tpu.memory_space<vmem>>, vector<1x128xf32>
    %72 = vector.broadcast %71 : vector<1x128xf32> to vector<8x128xf32>
    %73 = arith.addf %70, %72 : vector<8x128xf32>
    %c0_28 = arith.constant 0 : index
    %c0_29 = arith.constant 0 : index
    %74 = vector.load %arg9[%c0_28, %c0_29] : memref<8x128xi8, #tpu.memory_space<vmem>>, vector<8x128xi8>
    %c0_i8 = arith.constant 0 : i8
    %75 = vector.broadcast %c0_i8 : i8 to vector<8x128xi8>
    %76 = arith.cmpi ne, %74, %75 : vector<8x128xi8>
    %cst_30 = arith.constant -3.40282347E+38 : f32
    %77 = vector.broadcast %cst_30 : f32 to vector<8x128xf32>
    %78 = arith.select %76, %73, %77 : vector<8x128xi1>, vector<8x128xf32>
    %cst_31 = arith.constant dense<0xFF800000> : vector<8xf32>
    %79 = vector.multi_reduction <maximumf>, %78, %cst_31 [1] : vector<8x128xf32> to vector<8xf32>
    %80 = vector.shape_cast %79 : vector<8xf32> to vector<8x1xf32>
    %81 = vector.broadcast %80 : vector<8x1xf32> to vector<8x128xf32>
    %82 = arith.subf %78, %81 : vector<8x128xf32>
    %83 = math.exp %82 : vector<8x128xf32>
    %cst_32 = arith.constant dense<0.000000e+00> : vector<8xf32>
    %84 = vector.multi_reduction <add>, %83, %cst_32 [1] : vector<8x128xf32> to vector<8xf32>
    %85 = vector.shape_cast %84 : vector<8xf32> to vector<8x1xf32>
    %cst_33 = arith.constant 1.000000e+00 : f32
    %86 = vector.broadcast %cst_33 : f32 to vector<8x1xf32>
    %87 = arith.divf %86, %85 : vector<8x1xf32>
    %88 = vector.broadcast %87 : vector<8x1xf32> to vector<8x128xf32>
    %89 = arith.mulf %83, %88 : vector<8x128xf32>
    %90 = math.log %85 : vector<8x1xf32>
    %91 = vector.broadcast %90 : vector<8x1xf32> to vector<8x128xf32>
    %92 = arith.subf %82, %91 : vector<8x128xf32>
    %c0_34 = arith.constant 0 : index
    %c0_35 = arith.constant 0 : index
    %93 = vector.load %arg11[%c0_34, %c0_35] : memref<8x128xf32, #tpu.memory_space<vmem>>, vector<8x128xf32>
    tpu.vector_store %arg11[%c0_34, %c0_35], %89 {strides = array<i32>} : memref<8x128xf32, #tpu.memory_space<vmem>>, vector<8x128xf32>,
    %c0_36 = arith.constant 0 : index
    %c0_37 = arith.constant 0 : index
    %94 = vector.load %arg10[%c0_36, %c0_37] : memref<8x128xf32, #tpu.memory_space<vmem>>, vector<8x128xf32>
    %95 = arith.addf %78, %94 : vector<8x128xf32>
    %cst_38 = arith.constant dense<0xFF800000> : vector<8xf32>
    %96 = vector.multi_reduction <maximumf>, %95, %cst_38 [1] : vector<8x128xf32> to vector<8xf32>
    %97 = vector.shape_cast %96 : vector<8xf32> to vector<8x1xf32>
    %98 = tpu.iota {dimensions = array<i32: 1>} : vector<8x128xi32>
    %99 = vector.broadcast %97 : vector<8x1xf32> to vector<8x128xf32>
    %100 = arith.cmpf oeq, %95, %99 : vector<8x128xf32>
    %c128_i32 = arith.constant 128 : i32
    %101 = vector.broadcast %c128_i32 : i32 to vector<8x128xi32>
    %102 = arith.select %100, %98, %101 : vector<8x128xi1>, vector<8x128xi32>
    %cst_39 = arith.constant dense<2147483647> : vector<8xi32>
    %103 = vector.multi_reduction <minsi>, %102, %cst_39 [1] : vector<8x128xi32> to vector<8xi32>
    %104 = vector.shape_cast %103 : vector<8xi32> to vector<8x1xi32>
    %105 = vector.broadcast %104 : vector<8x1xi32> to vector<8x128xi32>
    %106 = arith.cmpi eq, %98, %105 : vector<8x128xi32>
    %cst_40 = arith.constant 0.000000e+00 : f32
    %107 = vector.broadcast %cst_40 : f32 to vector<8x128xf32>
    %108 = arith.select %106, %92, %107 : vector<8x128xi1>, vector<8x128xf32>
    %cst_41 = arith.constant dense<0.000000e+00> : vector<8xf32>
    %109 = vector.multi_reduction <add>, %108, %cst_41 [1] : vector<8x128xf32> to vector<8xf32>
    %110 = vector.shape_cast %109 : vector<8xf32> to vector<8x1xf32>
    %cst_42 = arith.constant 0.000000e+00 : f32
    %111 = vector.broadcast %cst_42 : f32 to vector<8x128xf32>
    %112 = arith.select %76, %92, %111 : vector<8x128xi1>, vector<8x128xf32>
    %113 = arith.mulf %112, %89 : vector<8x128xf32>
    %cst_43 = arith.constant dense<0.000000e+00> : vector<8xf32>
    %114 = vector.multi_reduction <add>, %113, %cst_43 [1] : vector<8x128xf32> to vector<8xf32>
    %115 = vector.shape_cast %114 : vector<8xf32> to vector<8x1xf32>
    %cst_44 = arith.constant 0.000000e+00 : f32
    %116 = vector.broadcast %cst_44 : f32 to vector<8x1xf32>
    %117 = arith.subf %116, %115 : vector<8x1xf32>
    %c0_45 = arith.constant 0 : index
    %c0_46 = arith.constant 0 : index
    %118 = vector.load %arg7[%c0_45, %c0_46] : memref<1x32xf32, #tpu.memory_space<vmem>>, vector<1x32xf32>
    %119 = vector.broadcast %118 : vector<1x32xf32> to vector<8x32xf32>
    %120 = arith.mulf %62, %119 : vector<8x32xf32>
    %cst_47 = arith.constant dense<0.000000e+00> : vector<8xf32>
    %121 = vector.multi_reduction <add>, %120, %cst_47 [1] : vector<8x32xf32> to vector<8xf32>
    %122 = vector.shape_cast %121 : vector<8xf32> to vector<8x1xf32>
    %c0_48 = arith.constant 0 : index
    %c0_49 = arith.constant 0 : index
    %123 = vector.load %arg8[%c0_48, %c0_49] : memref<1x1xf32, #tpu.memory_space<vmem>>, vector<1x1xf32>
    %124 = vector.broadcast %123 : vector<1x1xf32> to vector<8x1xf32>
    %125 = arith.addf %122, %124 : vector<8x1xf32>
    %126 = tpu.iota {dimensions = array<i32: 1>} : vector<8x128xi32>
    %c0_i32 = arith.constant 0 : i32
    %127 = vector.broadcast %c0_i32 : i32 to vector<8x128xi32>
    %128 = arith.cmpi eq, %126, %127 : vector<8x128xi32>
    %129 = arith.sitofp %104 : vector<8x1xi32> to vector<8x1xf32>
    %cst_50 = arith.constant 0.000000e+00 : f32
    %130 = vector.shape_cast %129 : vector<8x1xf32> to vector<8x1xf32>
    %131 = vector.broadcast %130 : vector<8x1xf32> to vector<8x128xf32>
    %132 = vector.broadcast %cst_50 : f32 to vector<8x128xf32>
    %133 = arith.select %128, %131, %132 : vector<8x128xi1>, vector<8x128xf32>
    %c1_i32 = arith.constant 1 : i32
    %134 = vector.broadcast %c1_i32 : i32 to vector<8x128xi32>
    %135 = arith.cmpi eq, %126, %134 : vector<8x128xi32>
    %136 = vector.shape_cast %110 : vector<8x1xf32> to vector<8x1xf32>
    %137 = vector.broadcast %136 : vector<8x1xf32> to vector<8x128xf32>
    %138 = arith.select %135, %137, %133 : vector<8x128xi1>, vector<8x128xf32>
    %c2_i32 = arith.constant 2 : i32
    %139 = vector.broadcast %c2_i32 : i32 to vector<8x128xi32>
    %140 = arith.cmpi eq, %126, %139 : vector<8x128xi32>
    %141 = vector.shape_cast %117 : vector<8x1xf32> to vector<8x1xf32>
    %142 = vector.broadcast %141 : vector<8x1xf32> to vector<8x128xf32>
    %143 = arith.select %140, %142, %138 : vector<8x128xi1>, vector<8x128xf32>
    %c3_i32 = arith.constant 3 : i32
    %144 = vector.broadcast %c3_i32 : i32 to vector<8x128xi32>
    %145 = arith.cmpi eq, %126, %144 : vector<8x128xi32>
    %146 = vector.shape_cast %125 : vector<8x1xf32> to vector<8x1xf32>
    %147 = vector.broadcast %146 : vector<8x1xf32> to vector<8x128xf32>
    %148 = arith.select %145, %147, %143 : vector<8x128xi1>, vector<8x128xf32>
    %c0_51 = arith.constant 0 : index
    %c0_52 = arith.constant 0 : index
    %149 = vector.load %arg12[%c0_51, %c0_52] : memref<8x128xf32, #tpu.memory_space<vmem>>, vector<8x128xf32>
    tpu.vector_store %arg12[%c0_51, %c0_52], %148 {strides = array<i32>} : memref<8x128xf32, #tpu.memory_space<vmem>>, vector<8x128xf32>,
    return
  }
  func.func @transform_0(%arg0: i32) -> (i32, i32) {
    %c0_i32 = arith.constant 0 : i32
    %c0_i32_0 = arith.constant 0 : i32
    return %arg0, %c0_i32 : i32, i32
  }
  func.func @transform_1(%arg0: i32) -> (i32, i32) {
    %c0_i32 = arith.constant 0 : i32
    %c0_i32_0 = arith.constant 0 : i32
    %c0_i32_1 = arith.constant 0 : i32
    return %c0_i32, %c0_i32_0 : i32, i32
  }
  func.func @transform_2(%arg0: i32) -> (i32, i32) {
    %c0_i32 = arith.constant 0 : i32
    %c0_i32_0 = arith.constant 0 : i32
    %c0_i32_1 = arith.constant 0 : i32
    return %c0_i32, %c0_i32_0 : i32, i32
  }
  func.func @transform_3(%arg0: i32) -> (i32, i32) {
    %c0_i32 = arith.constant 0 : i32
    %c0_i32_0 = arith.constant 0 : i32
    %c0_i32_1 = arith.constant 0 : i32
    return %c0_i32, %c0_i32_0 : i32, i32
  }
  func.func @transform_4(%arg0: i32) -> (i32, i32) {
    %c0_i32 = arith.constant 0 : i32
    %c0_i32_0 = arith.constant 0 : i32
    %c0_i32_1 = arith.constant 0 : i32
    return %c0_i32, %c0_i32_0 : i32, i32
  }
  func.func @transform_5(%arg0: i32) -> (i32, i32) {
    %c0_i32 = arith.constant 0 : i32
    %c0_i32_0 = arith.constant 0 : i32
    %c0_i32_1 = arith.constant 0 : i32
    return %c0_i32, %c0_i32_0 : i32, i32
  }
  func.func @transform_6(%arg0: i32) -> (i32, i32) {
    %c0_i32 = arith.constant 0 : i32
    %c0_i32_0 = arith.constant 0 : i32
    %c0_i32_1 = arith.constant 0 : i32
    return %c0_i32, %c0_i32_0 : i32, i32
  }
  func.func @transform_7(%arg0: i32) -> (i32, i32) {
    %c0_i32 = arith.constant 0 : i32
    %c0_i32_0 = arith.constant 0 : i32
    %c0_i32_1 = arith.constant 0 : i32
    return %c0_i32, %c0_i32_0 : i32, i32
  }
  func.func @transform_8(%arg0: i32) -> (i32, i32) {
    %c0_i32 = arith.constant 0 : i32
    %c0_i32_0 = arith.constant 0 : i32
    return %arg0, %c0_i32 : i32, i32
  }
  func.func @transform_9(%arg0: i32) -> (i32, i32) {
    %c0_i32 = arith.constant 0 : i32
    %c0_i32_0 = arith.constant 0 : i32
    return %arg0, %c0_i32 : i32, i32
  }
  func.func @transform_10(%arg0: i32) -> (i32, i32) {
    %c0_i32 = arith.constant 0 : i32
    %c0_i32_0 = arith.constant 0 : i32
    return %arg0, %c0_i32 : i32, i32
  }
  func.func @transform_11(%arg0: i32) -> (i32, i32) {
    %c0_i32 = arith.constant 0 : i32
    %c0_i32_0 = arith.constant 0 : i32
    return %arg0, %c0_i32 : i32, i32
  }
  func.func @transform_12(%arg0: i32) -> (i32, i32) {
    %c0_i32 = arith.constant 0 : i32
    %c0_i32_0 = arith.constant 0 : i32
    return %arg0, %c0_i32 : i32, i32
  }
  func.func @transform_13(%arg0: i32) -> (i32, i32) {
    %c0_i32 = arith.constant 0 : i32
    %c0_i32_0 = arith.constant 0 : i32
    return %arg0, %c0_i32 : i32, i32
  }
  func.func @transform_14(%arg0: i32) -> (i32, i32) {
    %c0_i32 = arith.constant 0 : i32
    %c0_i32_0 = arith.constant 0 : i32
    return %arg0, %c0_i32 : i32, i32
  }
  func.func @transform_15(%arg0: i32) -> (i32, i32) {
    %c0_i32 = arith.constant 0 : i32
    %c0_i32_0 = arith.constant 0 : i32
    return %arg0, %c0_i32 : i32, i32
  }
}

</mosaic_0001>

<llo_original>
// kernel: tpu_custom_call.1
$region0: #{tpu_custom_call.1}
  #allocation0 [shape = 'u32[]', space=smem, size = 0x4, offset = 0x4, fixed_abs, tag = 'smem constant byte address 0x4 - core index']
  #allocation1 [shape = 'u32[144,128]{1,0:T(1,128)}', space=vmem, size = 0x12000, scoped, tag = 'internal scratch']
  #allocation2 [shape = 'f32[1,1]{1,0:T(1,128)S(1)}', space=vmem, size = 0x200, scoped, tag = 'scoped memory for tpu_custom_call.1']
  %s0 = inlined_call_operand.hbm [shape: bf16[8,64], index: 0, kind: input, shape index: {}]
  %s1 = inlined_call_operand.hbm [shape: bf16[64,256], index: 1, kind: input, shape index: {}]
  %s2 = inlined_call_operand.hbm [shape: f32[1,128], index: 2, kind: input, shape index: {}]
  %s3 = inlined_call_operand.hbm [shape: f32[1,128], index: 3, kind: input, shape index: {}]
  %s4 = inlined_call_operand.vmem [shape: bf16[32,128], index: 4, kind: input, shape index: {}]
  %s5 = inlined_call_operand.hbm [shape: f32[1,128], index: 5, kind: input, shape index: {}]
  %s6 = inlined_call_operand.hbm [shape: f32[1,32], index: 6, kind: input, shape index: {}]
  %s7 = inlined_call_operand.<no memory space> [shape: f32[1,1], index: 7, kind: input, shape index: {}]
  %s8 = inlined_call_operand.vmem [shape: s8[8,128], index: 8, kind: input, shape index: {}]
  %s9 = inlined_call_operand.vmem [shape: f32[8,128], index: 9, kind: input, shape index: {}]
  %s10 = inlined_call_operand.hbm [shape: f32[8,128], index: 10, kind: output, shape index: {0}]
  %s11 = inlined_call_operand.hbm [shape: f32[8,128], index: 11, kind: output, shape index: {1}]
  %s12 = inlined_call_operand.hbm [shape: bf16[8,32], index: 12, kind: output, shape index: {2}]
  %s13 = inlined_call_operand.hbm [shape: f32[8,32], index: 13, kind: output, shape index: {3}]
  %s14 = inlined_call_operand.hbm [shape: bf16[8,32], index: 14, kind: output, shape index: {4}]
  %s15 = inlined_call_operand.hbm [shape: f32[8,32], index: 15, kind: output, shape index: {5}]
  %16 = xla_tuple %s10, %s11, %s12, %s13, %s14, %s15
  %s17 = sld [smem:[#allocation0]]
  $region114: #{tpu_custom_call.1} parent=0
    _
  %s19 = ssub.s32 1, %s17
  %s20 = scalar_select 0, %s19, %s17
  %v21 = vstv %s7
  %22 = vst [vmem:[#allocation2] sm:$0x1] %v21
  $region1: #{tpu_custom_call.1} parent=0
    #allocation3 [shape = 'u8[2048]{0}', space=vmem, size = 0x800, scoped, tag = 'input window, operand 0, single buffered']
    #allocation4 [shape = 's32[1]{0}', space=sflag, size = 0x4, scoped, tag = 'scoped memory for tpu_custom_call.1']
    #allocation5 [shape = 's32[1]{0}', space=sflag, size = 0x4, scoped, tag = 'scoped memory for tpu_custom_call.1']
    #allocation6 [shape = 'u8[32768]{0}', space=vmem, size = 0x8000, scoped, tag = 'input window, operand 1, single buffered']
    #allocation7 [shape = 's32[1]{0}', space=sflag, size = 0x4, scoped, tag = 'scoped memory for tpu_custom_call.1']
    #allocation8 [shape = 'u8[512]{0}', space=vmem, size = 0x400, scoped, tag = 'input window, operand 2, single buffered']
    #allocation9 [shape = 'u8[512]{0}', space=vmem, size = 0x400, scoped, tag = 'input window, operand 3, single buffered']
    #allocation10 [shape = 's32[1]{0}', space=sflag, size = 0x4, scoped, tag = 'scoped memory for tpu_custom_call.1']
    #allocation11 [shape = 'u8[512]{0}', space=vmem, size = 0x400, scoped, tag = 'input window, operand 5, single buffered']
    #allocation12 [shape = 'u8[512]{0}', space=vmem, size = 0x400, scoped, tag = 'input window, operand 6, single buffered']
    #allocation13 [shape = 's32[1]{0}', space=sflag, size = 0x4, scoped, tag = 'scoped memory for tpu_custom_call.1']
    #allocation14 [shape = 'u8[4096]{0}', space=vmem, size = 0x1000, scoped, tag = 'output window, operand 0, single buffered']
    #allocation15 [shape = 'u8[4096]{0}', space=vmem, size = 0x1000, scoped, tag = 'output window, operand 1, single buffered']
    #allocation16 [shape = 's32[1]{0}', space=sflag, size = 0x4, scoped, tag = 'scoped memory for tpu_custom_call.1']
    #allocation17 [shape = 'u8[2048]{0}', space=vmem, size = 0x800, scoped, tag = 'output window, operand 2, single buffered']
    #allocation18 [shape = 'u8[4096]{0}', space=vmem, size = 0x1000, scoped, tag = 'output window, operand 3, single buffered']
    #allocation19 [shape = 's32[1]{0}', space=sflag, size = 0x4, scoped, tag = 'scoped memory for tpu_custom_call.1']
    #allocation20 [shape = 'u8[2048]{0}', space=vmem, size = 0x800, scoped, tag = 'output window, operand 4, single buffered']
    #allocation21 [shape = 'u8[4096]{0}', space=vmem, size = 0x1000, scoped, tag = 'output window, operand 5, single buffered']
    #allocation22 [shape = 's32[1]{0}', space=sflag, size = 0x4, scoped, tag = 'scoped memory for tpu_custom_call.1']
    %23 = vsyncpa [#allocation4], 0
    %24 = vsyncpa [#allocation7], 0
    %25 = vsyncpa [#allocation10], 0
    %26 = vsyncpa [#allocation13], 0
    %27 = vsyncpa [#allocation5], 0
    %28 = vsyncpa [#allocation16], 0
    %29 = vsyncpa [#allocation19], 0
    %30 = vsyncpa [#allocation22], 0
    // Predicated region
    $region2: #{tpu_custom_call.1} parent=1 // pred_check
      _
    $region3: #{tpu_custom_call.1} parent=1 // pred_check_branch
      %32 = sbr.rel (0) target = $region5
    $region4: #{tpu_custom_call.1} parent=1 // pred_region
      %s34 = ssub.s32 64, 64
      %35 = vsyncadd [#allocation4], %s34
      %s37 = sshll.u32 [#allocation3], 4
      %s38 = int_to_ptr.vmem [resolvable:$true] %s37
      %40 = dma.hbm_to_vmem [thread:$0]  %s0, 64, %s38, [#allocation4]
    $region5: #{tpu_custom_call.1} parent=1 // pred_fallthru
      _
    // Predicated region
    $region6: #{tpu_custom_call.1} parent=1 // pred_check
      _
    $region7: #{tpu_custom_call.1} parent=1 // pred_check_branch
      %42 = sbr.rel (0) target = $region9
    $region8: #{tpu_custom_call.1} parent=1 // pred_region
      %s44 = ssub.s32 1024, 1024
      %45 = vsyncadd [#allocation7], %s44
      %s46 = sshll.u32 [#allocation6], 4
      %s47 = int_to_ptr.vmem [resolvable:$true] %s46
      %52 = dma.hbm_to_vmem [thread:$0]  %s1, 1024, %s47, [#allocation7], 128, 128, 8
    $region9: #{tpu_custom_call.1} parent=1 // pred_fallthru
      _
    // Predicated region
    $region10: #{tpu_custom_call.1} parent=1 // pred_check
      _
    $region11: #{tpu_custom_call.1} parent=1 // pred_check_branch
      %54 = sbr.rel (0) target = $region13
    $region12: #{tpu_custom_call.1} parent=1 // pred_region
      %s56 = ssub.s32 16, 16
      %57 = vsyncadd [#allocation7], %s56
      %s59 = sshll.u32 [#allocation8], 4
      %s60 = int_to_ptr.vmem [resolvable:$true] %s59
      %62 = dma.hbm_to_vmem [thread:$0]  %s2, 16, %s60, [#allocation7]
    $region13: #{tpu_custom_call.1} parent=1 // pred_fallthru
      _
    // Predicated region
    $region14: #{tpu_custom_call.1} parent=1 // pred_check
      _
    $region15: #{tpu_custom_call.1} parent=1 // pred_check_branch
      %64 = sbr.rel (0) target = $region17
    $region16: #{tpu_custom_call.1} parent=1 // pred_region
      %s66 = ssub.s32 16, 16
      %67 = vsyncadd [#allocation10], %s66
      %s69 = sshll.u32 [#allocation9], 4
      %s70 = int_to_ptr.vmem [resolvable:$true] %s69
      %72 = dma.hbm_to_vmem [thread:$0]  %s3, 16, %s70, [#allocation10]
    $region17: #{tpu_custom_call.1} parent=1 // pred_fallthru
      _
    // Predicated region
    $region18: #{tpu_custom_call.1} parent=1 // pred_check
      _
    $region19: #{tpu_custom_call.1} parent=1 // pred_check_branch
      %74 = sbr.rel (0) target = $region21
    $region20: #{tpu_custom_call.1} parent=1 // pred_region
      _
    $region21: #{tpu_custom_call.1} parent=1 // pred_fallthru
      _
    // Predicated region
    $region22: #{tpu_custom_call.1} parent=1 // pred_check
      _
    $region23: #{tpu_custom_call.1} parent=1 // pred_check_branch
      %76 = sbr.rel (0) target = $region25
    $region24: #{tpu_custom_call.1} parent=1 // pred_region
      %s78 = ssub.s32 16, 16
      %79 = vsyncadd [#allocation10], %s78
      %s81 = sshll.u32 [#allocation11], 4
      %s82 = int_to_ptr.vmem [resolvable:$true] %s81
      %84 = dma.hbm_to_vmem [thread:$0]  %s5, 16, %s82, [#allocation10]
    $region25: #{tpu_custom_call.1} parent=1 // pred_fallthru
      _
    // Predicated region
    $region26: #{tpu_custom_call.1} parent=1 // pred_check
      _
    $region27: #{tpu_custom_call.1} parent=1 // pred_check_branch
      %86 = sbr.rel (0) target = $region29
    $region28: #{tpu_custom_call.1} parent=1 // pred_region
      %s88 = ssub.s32 16, 16
      %89 = vsyncadd [#allocation13], %s88
      %s91 = sshll.u32 [#allocation12], 4
      %s92 = int_to_ptr.vmem [resolvable:$true] %s91
      %94 = dma.hbm_to_vmem [thread:$0]  %s6, 16, %s92, [#allocation13]
    $region29: #{tpu_custom_call.1} parent=1 // pred_fallthru
      _
    // Predicated region
    $region30: #{tpu_custom_call.1} parent=1 // pred_check
      _
    $region31: #{tpu_custom_call.1} parent=1 // pred_check_branch
      %96 = sbr.rel (0) target = $region33
    $region32: #{tpu_custom_call.1} parent=1 // pred_region
      _
    $region33: #{tpu_custom_call.1} parent=1 // pred_fallthru
      _
    // Predicated region
    $region34: #{tpu_custom_call.1} parent=1 // pred_check
      _
    $region35: #{tpu_custom_call.1} parent=1 // pred_check_branch
      %98 = sbr.rel (0) target = $region37
    $region36: #{tpu_custom_call.1} parent=1 // pred_region
      _
    $region37: #{tpu_custom_call.1} parent=1 // pred_fallthru
      _
    // Predicated region
    $region38: #{tpu_custom_call.1} parent=1 // pred_check
      _
    $region39: #{tpu_custom_call.1} parent=1 // pred_check_branch
      %100 = sbr.rel (0) target = $region41
    $region40: #{tpu_custom_call.1} parent=1 // pred_region
      _
    $region41: #{tpu_custom_call.1} parent=1 // pred_fallthru
      _
    // Predicated region
    $region42: #{tpu_custom_call.1} parent=1 // pred_check
      _
    $region43: #{tpu_custom_call.1} parent=1 // pred_check_branch
      %102 = sbr.rel (0) target = $region45
    $region44: #{tpu_custom_call.1} parent=1 // pred_region
      %103 = dma.done [#allocation4], 64
    $region45: #{tpu_custom_call.1} parent=1 // pred_fallthru
      _
    // Predicated region
    $region46: #{tpu_custom_call.1} parent=1 // pred_check
      _
    $region47: #{tpu_custom_call.1} parent=1 // pred_check_branch
      %105 = sbr.rel (0) target = $region49
    $region48: #{tpu_custom_call.1} parent=1 // pred_region
      %106 = dma.done [#allocation7], 1024
    $region49: #{tpu_custom_call.1} parent=1 // pred_fallthru
      _
    // Predicated region
    $region50: #{tpu_custom_call.1} parent=1 // pred_check
      _
    $region51: #{tpu_custom_call.1} parent=1 // pred_check_branch
      %108 = sbr.rel (0) target = $region53
    $region52: #{tpu_custom_call.1} parent=1 // pred_region
      %109 = dma.done [#allocation7], 16
    $region53: #{tpu_custom_call.1} parent=1 // pred_fallthru
      _
    // Predicated region
    $region54: #{tpu_custom_call.1} parent=1 // pred_check
      _
    $region55: #{tpu_custom_call.1} parent=1 // pred_check_branch
      %111 = sbr.rel (0) target = $region57
    $region56: #{tpu_custom_call.1} parent=1 // pred_region
      %112 = dma.done [#allocation10], 16
    $region57: #{tpu_custom_call.1} parent=1 // pred_fallthru
      _
    // Predicated region
    $region58: #{tpu_custom_call.1} parent=1 // pred_check
      _
    $region59: #{tpu_custom_call.1} parent=1 // pred_check_branch
      %114 = sbr.rel (0) target = $region61
    $region60: #{tpu_custom_call.1} parent=1 // pred_region
      %115 = dma.done [#allocation10], 16
    $region61: #{tpu_custom_call.1} parent=1 // pred_fallthru
      _
    // Predicated region
    $region62: #{tpu_custom_call.1} parent=1 // pred_check
      _
    $region63: #{tpu_custom_call.1} parent=1 // pred_check_branch
      %117 = sbr.rel (0) target = $region65
    $region64: #{tpu_custom_call.1} parent=1 // pred_region
      %118 = dma.done [#allocation13], 16
    $region65: #{tpu_custom_call.1} parent=1 // pred_fallthru
      _
    %v122 = vld [vmem:[#allocation3] sm:$0xf]
    %v123 = vld [vmem:[#allocation6] sm:$0xff]
    %v124 = vld [vmem:[#allocation6 + $0x8] sm:$0xff]
    %v125 = vld [vmem:[#allocation6 + $0x10] sm:$0xff]
    %v126 = vld [vmem:[#allocation6 + $0x18] sm:$0xff]
    %v127 = vld [vmem:[#allocation6 + $0x20] sm:$0xff]
    %v128 = vld [vmem:[#allocation6 + $0x28] sm:$0xff]
    %v129 = vld [vmem:[#allocation6 + $0x30] sm:$0xff]
    %v130 = vld [vmem:[#allocation6 + $0x38] sm:$0xff]
    %v139 = vunpack.c.l.b16 %v123
    %v140 = vunpack.c.h.b16 %v123
    %v141 = vunpack.c.l.b16 %v124
    %v142 = vunpack.c.h.b16 %v124
    %v143 = vunpack.c.l.b16 %v125
    %v144 = vunpack.c.h.b16 %v125
    %v145 = vunpack.c.l.b16 %v126
    %v146 = vunpack.c.h.b16 %v126
    %v147 = vunpack.c.l.b16 %v127
    %v148 = vunpack.c.h.b16 %v127
    %v149 = vunpack.c.l.b16 %v128
    %v150 = vunpack.c.h.b16 %v128
    %v151 = vunpack.c.l.b16 %v129
    %v152 = vunpack.c.h.b16 %v129
    %v153 = vunpack.c.l.b16 %v130
    %v154 = vunpack.c.h.b16 %v130
    %v155 = vpack.c.b16 %v141, %v139
    %v156 = vpack.c.b16 %v142, %v140
    %v157 = vpack.c.b16 %v145, %v143
    %v158 = vpack.c.b16 %v146, %v144
    %v159 = vpack.c.b16 %v149, %v147
    %v160 = vpack.c.b16 %v150, %v148
    %v161 = vpack.c.b16 %v153, %v151
    %v162 = vpack.c.b16 %v154, %v152
    %vm171 = vcmask 523264
    %v173 = vsel %vm171, %v122, 0
    %175 = vmatprep.subr.bf16.mxu0 %v156
    %176 = vmatpush1.bf16.msra.mxu0 %v155
    %177 = vmatprep.subr.bf16.mxu0 %v158
    %178 = vmatpush1.bf16.msra.mxu0 %v157
    %179 = vmatprep.subr.bf16.mxu0 %v160
    %180 = vmatpush1.bf16.msra.mxu0 %v159
    %181 = vmatprep.subr.bf16.mxu0 %v162
    %182 = vmatpush1.bf16.msra.mxu0 %v161
    %183 = vmatprep.subr.bf16.mxu0 0
    %184 = vmatpush1.bf16.msra.mxu0 0
    %185 = vmatprep.subr.bf16.mxu0 0
    %186 = vmatpush1.bf16.msra.mxu0 0
    %187 = vmatprep.subr.bf16.mxu0 0
    %188 = vmatpush1.bf16.msra.mxu0 0
    %189 = vmatprep.subr.bf16.mxu0 0
    %190 = vmatpush1.bf16.msra.mxu0 0
    %191 = vmatprep.subr.bf16.mxu0 0
    %192 = vmatpush1.bf16.msra.mxu0 0
    %193 = vmatprep.subr.bf16.mxu0 0
    %194 = vmatpush1.bf16.msra.mxu0 0
    %195 = vmatprep.subr.bf16.mxu0 0
    %196 = vmatpush1.bf16.msra.mxu0 0
    %197 = vmatprep.subr.bf16.mxu0 0
    %198 = vmatpush1.bf16.msra.mxu0 0
    %199 = vmatprep.subr.bf16.mxu0 0
    %200 = vmatpush1.bf16.msra.mxu0 0
    %201 = vmatprep.subr.bf16.mxu0 0
    %202 = vmatpush1.bf16.msra.mxu0 0
    %203 = vmatprep.subr.bf16.mxu0 0
    %204 = vmatpush1.bf16.msra.mxu0 0
    %205 = vmatprep.subr.bf16.mxu0 0
    %206 = vmatpush1.bf16.msra.mxu0 0
    %207 = vmatprep.mubr.bf16.mxu0 0
    %208 = vmatmul.mubr.bf16.gmra.mrb[0].mxu0 %v173
    %v209 = vpop.f32.mrb[0].mxu0
    %v210 = vadd.f32 0.0, %v209
    %v211 = vpop.f32.mrb[0].mxu0
    %v212 = vadd.f32 0.0, %v211
    %v213 = vpop.f32.mrb[0].mxu0
    %v214 = vpop.f32.mrb[0].mxu0
    %215 = vdwg.mxu0
    %v216 = vld [vmem:[#allocation8] sm:$0x1]
    %v218 = vlaneseq
    %v219 = vshrl.u32 %v218, 7
    %v220 = vsub.s32 0, %v219
    %v221 = vrot.slane %v216, %v220
    %v223 = vadd.f32 %v210, %v221
    %v224 = vld [vmem:[#allocation9] sm:$0x1]
    %v226 = vlaneseq
    %v227 = vshrl.u32 %v226, 7
    %v228 = vsub.s32 0, %v227
    %v229 = vrot.slane %v224, %v228
    %v231 = vadd.f32 %v212, %v229
    %v232 = vxor.u32 %v223, 2147483648
    %v233 = vmul.f32 %v232, 1.442695
    %v234 = vpow.pop %v233
    %v235 = vadd.f32 %v234, 1.0
    %v236 = vrcp.pop %v235
    %v237 = vmul.f32 1.0, %v236
    %v238 = vtanh.pop %v223
    %v239 = vmul.f32 %v237, 0.0
    %241 = vrot.lane.b32.xlu0 %v238, 64
    %v242 = vpop.permute.xlu0 %241
    %v244 = vmul.f32 %v237, %v242
    %246 = vrot.lane.b32.xlu0 %v244, 96
    %v247 = vpop.permute.xlu0 %246
    %v249 = vadd.f32 %v239, %v247
    %v250 = vtanh.pop %v249
    %252 = vrot.lane.b32.xlu0 %v250, 64
    %v253 = vpop.permute.xlu0 %252
    %v255 = vmul.f32 %v237, %v253
    %v256 = vxor.u32 %v231, 2147483648
    %v257 = vmul.f32 %v256, 1.442695
    %v258 = vpow.pop %v257
    %v259 = vadd.f32 %v258, 1.0
    %v260 = vrcp.pop %v259
    %v261 = vmul.f32 1.0, %v260
    %v262 = vtanh.pop %v231
    %v263 = vmul.f32 %v261, 0.0
    %265 = vrot.lane.b32.xlu0 %v262, 64
    %v266 = vpop.permute.xlu0 %265
    %v268 = vmul.f32 %v261, %v266
    %270 = vrot.lane.b32.xlu0 %v268, 96
    %v271 = vpop.permute.xlu0 %270
    %v273 = vadd.f32 %v263, %v271
    %v274 = vtanh.pop %v273
    %276 = vrot.lane.b32.xlu0 %v274, 64
    %v277 = vpop.permute.xlu0 %276
    %v279 = vmul.f32 %v261, %v277
    %v280 = vpack.c.bf16 %v255, %v255
    %v281 = vpack.c.bf16 %v279, %v279
    %v283 = vunpack.c.l.b16 %v280
    %v284 = vpack.c.b16 %v283, %v283
    %285 = vrot.lane.b32.xlu0 %v284, 64
    %v286 = vpop.permute.xlu0 %285
    %vm288 = vcmask 257024
    %289 = vst.msk [vmem:[#allocation17] sm:$0xf] %vm288, %v286
    %vm290 = vcmask 261120
    %291 = vst.msk [vmem:[#allocation18] sm:$0xff] %vm290, %v249
    %v293 = vunpack.c.l.b16 %v281
    %v294 = vpack.c.b16 %v293, %v293
    %295 = vrot.lane.b32.xlu0 %v294, 64
    %v296 = vpop.permute.xlu0 %295
    %298 = vst.msk [vmem:[#allocation20] sm:$0xf] %vm288, %v296
    %299 = vst.msk [vmem:[#allocation21] sm:$0xff] %vm290, %v273
    %v300 = vld [vmem:[%s4] sm:$0xf]
    %v301 = vld [vmem:[%s4 + $0x4] sm:$0xf]
    %v302 = vld [vmem:[%s4 + $0x8] sm:$0xf]
    %v303 = vld [vmem:[%s4 + $0xc] sm:$0xf]
    %v304 = vld [vmem:[#allocation11] sm:$0x1]
    %v306 = vlaneseq
    %v307 = vshrl.u32 %v306, 7
    %v308 = vsub.s32 0, %v307
    %v309 = vrot.slane %v304, %v308
    %311 = vrot.lane.b32.xlu0 %v280, 64
    %v312 = vpop.permute.xlu0 %311
    %v317 = vunpack.c.l.b16 %v300
    %v318 = vunpack.c.l.b16 %v301
    %v319 = vunpack.c.l.b16 %v302
    %v320 = vunpack.c.l.b16 %v303
    %v321 = vpack.c.b16 %v318, %v317
    %v322 = vpack.c.b16 %v320, %v319
    %v326 = vsel %vm290, %v312, 0
    %328 = vmatprep.subr.bf16.mxu0 0
    %329 = vmatpush1.bf16.msra.mxu0 %v321
    %330 = vmatprep.subr.bf16.mxu0 0
    %331 = vmatpush1.bf16.msra.mxu0 %v322
    %332 = vmatprep.subr.bf16.mxu0 0
    %333 = vmatpush1.bf16.msra.mxu0 0
    %334 = vmatprep.subr.bf16.mxu0 0
    %335 = vmatpush1.bf16.msra.mxu0 0
    %336 = vmatprep.subr.bf16.mxu0 0
    %337 = vmatpush1.bf16.msra.mxu0 0
    %338 = vmatprep.subr.bf16.mxu0 0
    %339 = vmatpush1.bf16.msra.mxu0 0
    %340 = vmatprep.subr.bf16.mxu0 0
    %341 = vmatpush1.bf16.msra.mxu0 0
    %342 = vmatprep.subr.bf16.mxu0 0
    %343 = vmatpush1.bf16.msra.mxu0 0
    %344 = vmatprep.subr.bf16.mxu0 0
    %345 = vmatpush1.bf16.msra.mxu0 0
    %346 = vmatprep.subr.bf16.mxu0 0
    %347 = vmatpush1.bf16.msra.mxu0 0
    %348 = vmatprep.subr.bf16.mxu0 0
    %349 = vmatpush1.bf16.msra.mxu0 0
    %350 = vmatprep.subr.bf16.mxu0 0
    %351 = vmatpush1.bf16.msra.mxu0 0
    %352 = vmatprep.subr.bf16.mxu0 0
    %353 = vmatpush1.bf16.msra.mxu0 0
    %354 = vmatprep.subr.bf16.mxu0 0
    %355 = vmatpush1.bf16.msra.mxu0 0
    %356 = vmatprep.subr.bf16.mxu0 0
    %357 = vmatpush1.bf16.msra.mxu0 0
    %358 = vmatprep.subr.bf16.mxu0 0
    %359 = vmatpush1.bf16.msra.mxu0 0
    %360 = vmatprep.mubr.bf16.mxu0 0
    %361 = vmatmul.mubr.bf16.gmra.mrb[0].mxu0 %v326
    %v362 = vpop.f32.mrb[0].mxu0
    %v363 = vadd.f32 %v309, %v362
    %v364 = vpop.f32.mrb[0].mxu0
    %v365 = vpop.f32.mrb[0].mxu0
    %v366 = vpop.f32.mrb[0].mxu0
    %367 = vdwg.mxu0
    %v368 = vld [vmem:[%s8] sm:$0x3]
    %vm369 = vnez %v368
    %v370 = vsel %vm369, 16843009, 0
    %v371 = vunpack.c.0.s8 %v370
    %vm372 = vcmp.ne.s32.totalorder %v371, 0
    %v373 = vsel %vm372, %v363, -3.4028235e+38
    %374 = vmax.xlane.f32.xlu0 %v373
    %v375 = vpop.xlane.xlu0 %374
    %v376 = vsub.f32 %v373, %v375
    %v377 = vmul.f32 %v376, 1.442695
    %v378 = vpow.pop %v377
    %379 = vadd.xlane.f32.xlu0 %v378
    %v380 = vpop.xlane.xlu0 %379
    %v381 = vrcp.pop %v380
    %v382 = vmul.f32 1.0, %v381
    %v383 = vmul.f32 %v378, %v382
    %v384 = vlog2.pop %v380
    %v385 = vmul.f32 %v384, 0.6931472
    %v386 = vsub.f32 %v376, %v385
    %387 = vst [vmem:[#allocation14] sm:$0xff] %v383
    %v388 = vld [vmem:[%s9] sm:$0xff]
    %v389 = vadd.f32 %v373, %v388
    %390 = vmax.xlane.f32.xlu0 %v389
    %v391 = vpop.xlane.xlu0 %390
    %v392 = vlaneseq
    %v393 = vand.u32 %v392, 127
    %vm394 = vcmp.eq.f32.partialorder %v389, %v391
    %v395 = vsel %vm394, %v393, 128
    %v396 = vand.u32 %v395, 65535
    %v397 = vshra.s32 %v395, 16
    %v398 = vcvt.s32.f32 %v396
    %v399 = vcvt.s32.f32 %v397
    %400 = vmin.xlane.f32.xlu0 %v399
    %v401 = vpop.xlane.xlu0 %400
    %vm402 = vcmp.eq.f32.partialorder %v399, %v401
    %v403 = vsel %vm402, %v398, inf
    %404 = vmin.xlane.f32.xlu0 %v403
    %v405 = vpop.xlane.xlu0 %404
    %v406 = vcvt.f32.s32 %v405
    %v407 = vcvt.f32.s32 %v401
    %v408 = vshll.u32 %v407, 16
    %v409 = vadd.s32 %v408, %v406
    %vm410 = vcmp.eq.s32.totalorder %v393, %v409
    %v411 = vsel %vm410, %v386, 0.0
    %412 = vadd.xlane.f32.xlu0 %v411
    %v413 = vpop.xlane.xlu0 %412
    %v414 = vsel %vm372, %v386, 0.0
    %v415 = vmul.f32 %v414, %v383
    %416 = vadd.xlane.f32.xlu0 %v415
    %v417 = vpop.xlane.xlu0 %416
    %v418 = vsub.f32 0.0, %v417
    %v419 = vld [vmem:[#allocation12] sm:$0x1]
    %v421 = vlaneseq
    %v422 = vshrl.u32 %v421, 7
    %v423 = vsub.s32 0, %v422
    %v424 = vrot.slane %v419, %v423
    %425 = vrot.lane.b32.xlu0 %v424, 64
    %v426 = vpop.permute.xlu0 %425
    %v428 = vmul.f32 %v279, %v426
    %430 = vrot.lane.b32.xlu0 %v428, 64
    %v431 = vpop.permute.xlu0 %430
    %v433 = vsel %vm290, %v431, 0.0
    %434 = vadd.xlane.f32.xlu0 %v433
    %v435 = vpop.xlane.xlu0 %434
    %v436 = vld [vmem:[#allocation2] sm:$0x1]
    %v438 = vlaneseq
    %v439 = vshrl.u32 %v438, 7
    %v440 = vsub.s32 0, %v439
    %v441 = vrot.slane %v436, %v440
    %v443 = vadd.f32 %v435, %v441
    %vm444 = vcmp.eq.s32.totalorder %v393, 0
    %v445 = vcvt.s32.f32 %v409
    %v446 = vsel %vm444, %v445, 0.0
    %vm447 = vcmp.eq.s32.totalorder %v393, 1
    %v448 = vsel %vm447, %v413, %v446
    %vm449 = vcmp.eq.s32.totalorder %v393, 2
    %v450 = vsel %vm449, %v418, %v448
    %vm451 = vcmp.eq.s32.totalorder %v393, 3
    %453 = vset.pattern.permute.xlu0 0
    %454 = vperm.xlu0 %453, %v443
    %v455 = vpop.permute.xlu0 %454
    %v457 = vsel %vm451, %v455, %v450
    %458 = vst [vmem:[#allocation15] sm:$0xff] %v457
    // Predicated region
    $region66: #{tpu_custom_call.1} parent=1 // pred_check
      _
    $region67: #{tpu_custom_call.1} parent=1 // pred_check_branch
      %460 = sbr.rel (0) target = $region69
    $region68: #{tpu_custom_call.1} parent=1 // pred_region
      %s462 = ssub.s32 128, 128
      %463 = vsyncadd [#allocation5], %s462
      %s465 = sshll.u32 [#allocation14], 4
      %s466 = int_to_ptr.vmem [resolvable:$true] %s465
      %468 = dma.vmem_to_hbm [thread:$0]  %s466, 128, %s10, [#allocation5]
    $region69: #{tpu_custom_call.1} parent=1 // pred_fallthru
      _
    // Predicated region
    $region70: #{tpu_custom_call.1} parent=1 // pred_check
      _
    $region71: #{tpu_custom_call.1} parent=1 // pred_check_branch
      %470 = sbr.rel (0) target = $region73
    $region72: #{tpu_custom_call.1} parent=1 // pred_region
      %s472 = ssub.s32 128, 128
      %473 = vsyncadd [#allocation16], %s472
      %s475 = sshll.u32 [#allocation15], 4
      %s476 = int_to_ptr.vmem [resolvable:$true] %s475
      %478 = dma.vmem_to_hbm [thread:$0]  %s476, 128, %s11, [#allocation16]
    $region73: #{tpu_custom_call.1} parent=1 // pred_fallthru
      _
    // Predicated region
    $region74: #{tpu_custom_call.1} parent=1 // pred_check
      _
    $region75: #{tpu_custom_call.1} parent=1 // pred_check_branch
      %480 = sbr.rel (0) target = $region77
    $region76: #{tpu_custom_call.1} parent=1 // pred_region
      %s482 = ssub.s32 64, 64
      %483 = vsyncadd [#allocation16], %s482
      %s485 = sshll.u32 [#allocation17], 4
      %s486 = int_to_ptr.vmem [resolvable:$true] %s485
      %488 = dma.vmem_to_hbm [thread:$0]  %s486, 64, %s12, [#allocation16]
    $region77: #{tpu_custom_call.1} parent=1 // pred_fallthru
      _
    // Predicated region
    $region78: #{tpu_custom_call.1} parent=1 // pred_check
      _
    $region79: #{tpu_custom_call.1} parent=1 // pred_check_branch
      %490 = sbr.rel (0) target = $region81
    $region80: #{tpu_custom_call.1} parent=1 // pred_region
      %s492 = ssub.s32 128, 128
      %493 = vsyncadd [#allocation19], %s492
      %s495 = sshll.u32 [#allocation18], 4
      %s496 = int_to_ptr.vmem [resolvable:$true] %s495
      %498 = dma.vmem_to_hbm [thread:$0]  %s496, 128, %s13, [#allocation19]
    $region81: #{tpu_custom_call.1} parent=1 // pred_fallthru
      _
    // Predicated region
    $region82: #{tpu_custom_call.1} parent=1 // pred_check
      _
    $region83: #{tpu_custom_call.1} parent=1 // pred_check_branch
      %500 = sbr.rel (0) target = $region85
    $region84: #{tpu_custom_call.1} parent=1 // pred_region
      %s502 = ssub.s32 64, 64
      %503 = vsyncadd [#allocation19], %s502
      %s505 = sshll.u32 [#allocation20], 4
      %s506 = int_to_ptr.vmem [resolvable:$true] %s505
      %508 = dma.vmem_to_hbm [thread:$0]  %s506, 64, %s14, [#allocation19]
    $region85: #{tpu_custom_call.1} parent=1 // pred_fallthru
      _
    // Predicated region
    $region86: #{tpu_custom_call.1} parent=1 // pred_check
      _
    $region87: #{tpu_custom_call.1} parent=1 // pred_check_branch
      %510 = sbr.rel (0) target = $region89
    $region88: #{tpu_custom_call.1} parent=1 // pred_region
      %s512 = ssub.s32 128, 128
      %513 = vsyncadd [#allocation22], %s512
      %s515 = sshll.u32 [#allocation21], 4
      %s516 = int_to_ptr.vmem [resolvable:$true] %s515
      %518 = dma.vmem_to_hbm [thread:$0]  %s516, 128, %s15, [#allocation22]
    $region89: #{tpu_custom_call.1} parent=1 // pred_fallthru
      _
    // Predicated region
    $region90: #{tpu_custom_call.1} parent=1 // pred_check
      _
    $region91: #{tpu_custom_call.1} parent=1 // pred_check_branch
      %520 = sbr.rel (0) target = $region93
    $region92: #{tpu_custom_call.1} parent=1 // pred_region
      %521 = dma.done [#allocation5], 128
    $region93: #{tpu_custom_call.1} parent=1 // pred_fallthru
      _
    // Predicated region
    $region94: #{tpu_custom_call.1} parent=1 // pred_check
      _
    $region95: #{tpu_custom_call.1} parent=1 // pred_check_branch
      %523 = sbr.rel (0) target = $region97
    $region96: #{tpu_custom_call.1} parent=1 // pred_region
      %524 = dma.done [#allocation16], 128
    $region97: #{tpu_custom_call.1} parent=1 // pred_fallthru
      _
    // Predicated region
    $region98: #{tpu_custom_call.1} parent=1 // pred_check
      _
    $region99: #{tpu_custom_call.1} parent=1 // pred_check_branch
      %526 = sbr.rel (0) target = $region101
    $region100: #{tpu_custom_call.1} parent=1 // pred_region
      %527 = dma.done [#allocation16], 64
    $region101: #{tpu_custom_call.1} parent=1 // pred_fallthru
      _
    // Predicated region
    $region102: #{tpu_custom_call.1} parent=1 // pred_check
      _
    $region103: #{tpu_custom_call.1} parent=1 // pred_check_branch
      %529 = sbr.rel (0) target = $region105
    $region104: #{tpu_custom_call.1} parent=1 // pred_region
      %530 = dma.done [#allocation19], 128
    $region105: #{tpu_custom_call.1} parent=1 // pred_fallthru
      _
    // Predicated region
    $region106: #{tpu_custom_call.1} parent=1 // pred_check
      _
    $region107: #{tpu_custom_call.1} parent=1 // pred_check_branch
      %532 = sbr.rel (0) target = $region109
    $region108: #{tpu_custom_call.1} parent=1 // pred_region
      %533 = dma.done [#allocation19], 64
    $region109: #{tpu_custom_call.1} parent=1 // pred_fallthru
      _
    // Predicated region
    $region110: #{tpu_custom_call.1} parent=1 // pred_check
      _
    $region111: #{tpu_custom_call.1} parent=1 // pred_check_branch
      %535 = sbr.rel (0) target = $region113
    $region112: #{tpu_custom_call.1} parent=1 // pred_region
      %536 = dma.done [#allocation22], 128
    $region113: #{tpu_custom_call.1} parent=1 // pred_fallthru
      _
    %537 = vsyncpa [#allocation4], 1
    %538 = vsyncpa [#allocation7], 1
    %539 = vsyncpa [#allocation10], 1
    %540 = vsyncpa [#allocation13], 1
    %541 = vsyncpa [#allocation5], 1
    %542 = vsyncpa [#allocation16], 1
    %543 = vsyncpa [#allocation19], 1
    %544 = vsyncpa [#allocation22], 1

</llo_original>
